<compile_context>
chip_gen: v7x
topology: tpu7x:2x2x1
jax: 0.10.0
libtpu: 0.0.40
codegen_flags: <defaults>
</compile_context>

<pallas_src>
import functools
import numpy as np
import jax
import jax.numpy as jnp
from jax.experimental import pallas as pl
from jax.experimental.pallas import tpu as pltpu

LOG_SQRT_2PI = 0.9189385332046727  # 0.5 * log(2*pi)


def agent_kernel(low, step, obs_dim, offs, x_ref, slab_ref, eps_ref, out_ref):
    """Whole Agent.get_action_and_value; all params live in one VMEM slab."""
    r_wsh, r_bsh, r_wbr, r_bbr, r_whd, r_bhd, r_scal = offs
    W = slab_ref.shape[1]  # common lane width of every packed sub-block

    # --- shared trunk: Linear + ReLU  (output lane-padded to W, pads stay 0)
    w_sh = slab_ref[r_wsh:r_wsh + obs_dim, :]            # (obs_dim, W)
    b_sh = slab_ref[r_bsh:r_bsh + 1, :]                  # (1, W)
    h = jnp.dot(x_ref[...], w_sh, preferred_element_type=jnp.float32) + b_sh
    h = jnp.maximum(h, 0.0)                              # (B, W)

    # --- fused pi|vf branch: one Linear + ReLU
    w_br = slab_ref[r_wbr:r_wbr + W, :]                  # (W, W)
    b_br = slab_ref[r_bbr:r_bbr + 1, :]                  # (1, W)
    hb = jnp.dot(h, w_br, preferred_element_type=jnp.float32) + b_br
    hb = jnp.maximum(hb, 0.0)                            # (B, W)

    # --- fused heads via block-diagonal weight -> [mu, value, 0, ...]
    w_hd = slab_ref[r_whd:r_whd + W, :]                  # (W, W)
    b_hd = slab_ref[r_bhd:r_bhd + 1, :]                  # (1, W)
    head = jnp.dot(hb, w_hd, preferred_element_type=jnp.float32) + b_hd
    mu = head[:, 0:1]                                    # (B, 1)
    value = head[:, 1:2]                                 # (B, 1)

    # --- precomputed logstd-derived scalars (hoisted to pack_params)
    scal = slab_ref[r_scal:r_scal + 1, :]                # (1, W)
    std = scal[:, 0:1]                                   # exp(logstd)
    inv_2var = scal[:, 1:2]                              # 0.5 / std^2
    logp_off = scal[:, 2:3]                              # -(logstd + log sqrt(2pi))
    ent_c = scal[:, 3:4]                                 # logstd + 0.5 + log sqrt(2pi)

    # Normal(mu, std) sample with host-supplied eps
    raw = mu + std * eps_ref[...]                        # (B, 1)

    # _adjust_actions: snap to nearest of linspace(low, high, 5) — closed form
    k = jnp.clip(jnp.floor((raw - low) * (1.0 / step) + 0.5), 0.0, 4.0)
    adj = low + k * step

    # Normal log_prob at snapped action, entropy (action_dim = 1, summed dim)
    logp = -((adj - mu) ** 2) * inv_2var + logp_off      # (B, 1)
    ent = jnp.zeros_like(mu) + ent_c                     # (B, 1)

    # pack the 4 result columns into one lane-packed output slab
    B = mu.shape[0]
    col = jax.lax.broadcasted_iota(jnp.int32, (B, 4), 1)
    out_ref[...] = jnp.where(col == 0, adj,
                   jnp.where(col == 1, value,
                   jnp.where(col == 2, logp, ent)))


def pack_params(params):
    """One-time packing of the Agent weights + logstd math into one f32 slab.

    Layout (row offsets all multiples of 8, common lane width W):
      w_sh | b_sh | w_br (pi|vf fused) | b_br | w_hd (block-diag) | b_hd | scalars
    Must be re-run whenever the policy parameters change.
    """
    obs_dim, shared_h = params["w_sh"].shape
    pi_h = params["w_pi"].shape[1]
    vf_h = params["w_vf"].shape[1]
    W = max(shared_h, pi_h + vf_h)
    assert W % 8 == 0 and W <= 128

    def rpad(n):  # round rows up to a multiple of 8 sublanes
        return -(-n // 8) * 8

    blocks, offs = [], {}
    row = 0

    def add(name, arr2d):
        nonlocal row
        a = np.asarray(arr2d, np.float32)
        blk = np.zeros((rpad(a.shape[0]), W), np.float32)
        blk[:a.shape[0], :a.shape[1]] = a
        offs[name] = row
        row += blk.shape[0]
        blocks.append(blk)

    # shared trunk
    add("w_sh", params["w_sh"])                                         # (obs, sh)
    add("b_sh", params["b_sh"])                                         # (1, sh)
    # fused pi|vf branch; input rows padded to W (padded h lanes are 0)
    w_br = np.concatenate([np.asarray(params["w_pi"], np.float32),
                           np.asarray(params["w_vf"], np.float32)], axis=1)
    w_br_full = np.zeros((W, pi_h + vf_h), np.float32)
    w_br_full[:shared_h, :] = w_br
    add("w_br", w_br_full)                                              # (W, pi+vf)
    add("b_br", np.concatenate([np.asarray(params["b_pi"], np.float32),
                                np.asarray(params["b_vf"], np.float32)], axis=1))
    # fused heads: block-diagonal [[w_mu, 0], [0, w_c]] -> columns [mu, value]
    w_hd_full = np.zeros((W, 2), np.float32)
    w_hd_full[:pi_h, 0:1] = np.asarray(params["w_mu"], np.float32)
    w_hd_full[pi_h:pi_h + vf_h, 1:2] = np.asarray(params["w_c"], np.float32)
    add("w_hd", w_hd_full)
    add("b_hd", np.concatenate([np.asarray(params["b_mu"], np.float32),
                                np.asarray(params["b_c"], np.float32)], axis=1))
    # logstd-derived scalars, precomputed once (no exp/div in the kernel)
    logstd = float(np.asarray(params["logstd"]).reshape(()))
    std = float(np.exp(logstd))
    add("scal", np.array([[std,
                           0.5 / (std * std),
                           -(logstd + LOG_SQRT_2PI),
                           logstd + 0.5 + LOG_SQRT_2PI]], np.float32))

    slab = jnp.asarray(np.concatenate(blocks, axis=0))                  # (rows, W)
    order = ("w_sh", "b_sh", "w_br", "b_br", "w_hd", "b_hd", "scal")
    return slab, tuple(int(offs[k]) for k in order)


def agent_forward(x, slab, offs, eps, low, high):
    """One un-gridded Pallas call; returns lane-packed (B, 4) result slab:
       column 0 = action, 1 = value, 2 = log_prob, 3 = entropy."""
    B, obs_dim = x.shape
    step = (float(high) - float(low)) / 4.0
    kernel = functools.partial(agent_kernel, float(low), step, int(obs_dim), offs)
    return pl.pallas_call(
        kernel,
        out_shape=jax.ShapeDtypeStruct((B, 4), jnp.float32),
        in_specs=[pl.BlockSpec(memory_space=pltpu.MemorySpace.VMEM)] * 3,
        out_specs=pl.BlockSpec(memory_space=pltpu.MemorySpace.VMEM),
    )(x, slab, eps)


def agent_forward_ref(x, params, eps, fixed_vals):
    """Pure-JAX reference of the PyTorch forward pass (for correctness check)."""
    h = jnp.maximum(x @ params["w_sh"] + params["b_sh"], 0.0)
    hp = jnp.maximum(h @ params["w_pi"] + params["b_pi"], 0.0)
    mu = hp @ params["w_mu"] + params["b_mu"]
    hv = jnp.maximum(h @ params["w_vf"] + params["b_vf"], 0.0)
    value = hv @ params["w_c"] + params["b_c"]
    std = jnp.exp(params["logstd"])
    raw = mu + std * eps
    diff = jnp.abs(raw - fixed_vals)
    idx = jnp.argmin(diff, axis=1)
    adj = jnp.take_along_axis(jnp.broadcast_to(fixed_vals, diff.shape),
                              idx[:, None], axis=1)
    std_b = jnp.broadcast_to(std, mu.shape)
    logp = (-((adj - mu) ** 2) / (2.0 * std_b ** 2) - jnp.log(std_b) - LOG_SQRT_2PI).sum(1)
    ent = (0.5 + LOG_SQRT_2PI + jnp.log(std_b)).sum(1)
    return adj, value, logp, ent


def make_params(key, obs_dim, shared_h, pi_h, vf_h):
    ks = jax.random.split(key, 11)
    scale = 0.1
    return {
        "w_sh": jax.random.normal(ks[0], (obs_dim, shared_h), jnp.float32) * scale,
        "b_sh": jax.random.normal(ks[1], (1, shared_h), jnp.float32) * scale,
        "w_pi": jax.random.normal(ks[2], (shared_h, pi_h), jnp.float32) * scale,
        "b_pi": jax.random.normal(ks[3], (1, pi_h), jnp.float32) * scale,
        "w_mu": jax.random.normal(ks[4], (pi_h, 1), jnp.float32) * scale,
        "b_mu": jax.random.normal(ks[5], (1, 1), jnp.float32) * scale,
        "w_vf": jax.random.normal(ks[6], (shared_h, vf_h), jnp.float32) * scale,
        "b_vf": jax.random.normal(ks[7], (1, vf_h), jnp.float32) * scale,
        "w_c": jax.random.normal(ks[8], (vf_h, 1), jnp.float32) * scale,
        "b_c": jax.random.normal(ks[9], (1, 1), jnp.float32) * scale,
        # actor_logstd is initialized to zeros in the module
        "logstd": jnp.zeros((1, 1), jnp.float32),
    }


if __name__ == "__main__":
    B = 8          # batch of environments
    OBS_DIM = 16   # prod(single_observation_space.shape)
    SHARED_H = 32  # shared net hidden
    PI_H = 32      # policy-branch hidden
    VF_H = 32      # value-branch hidden
    LOW, HIGH = -1.0, 1.0  # single_action_space bounds (action_dim = 1)

    key = jax.random.PRNGKey(0)
    k_param, k_x, k_eps = jax.random.split(key, 3)

    params = make_params(k_param, OBS_DIM, SHARED_H, PI_H, VF_H)
    slab, offs = pack_params(params)
    x = jax.random.normal(k_x, (B, OBS_DIM), jnp.float32)
    eps = jax.random.normal(k_eps, (B, 1), jnp.float32)   # Normal.sample() noise
    fixed_vals = jnp.linspace(LOW, HIGH, 5, dtype=jnp.float32).reshape(1, 5)

    out = agent_forward(x, slab, offs, eps, LOW, HIGH)
    jax.block_until_ready(out)

    # split the packed result only for the correctness check
    act, val, logp, ent = out[:, 0:1], out[:, 1:2], out[:, 2], out[:, 3]

    # sanity check against pure-JAX reference of the PyTorch module
    r_act, r_val, r_logp, r_ent = agent_forward_ref(x, params, eps, fixed_vals)
    np.testing.assert_allclose(np.asarray(act), np.asarray(r_act), atol=2e-5, rtol=2e-5)
    np.testing.assert_allclose(np.asarray(val), np.asarray(r_val), atol=2e-5, rtol=2e-5)
    np.testing.assert_allclose(np.asarray(logp), np.asarray(r_logp), atol=2e-5, rtol=2e-5)
    np.testing.assert_allclose(np.asarray(ent), np.asarray(r_ent), atol=2e-5, rtol=2e-5)

    print("KERNEL_OK")
</pallas_src>

<mosaic_0001>
module attributes {stable_mosaic.version = 11 : i64} {
  func.func @agent_kernel(%arg0: memref<8x16xf32, #tpu.memory_space<vmem>>, %arg1: memref<176x64xf32, #tpu.memory_space<vmem>>, %arg2: memref<8x1xf32, #tpu.memory_space<vmem>>, %arg3: memref<8x4xf32, #tpu.memory_space<vmem>>) attributes {dimension_semantics = [], scalar_prefetch = 0 : i64, scratch_operands = 0 : i64, tpu.core_type = #tpu.core_type<tc>} {
    %c0 = arith.constant 0 : index
    %c0_0 = arith.constant 0 : index
    %0 = vector.load %arg1[%c0, %c0_0] : memref<176x64xf32, #tpu.memory_space<vmem>>, vector<16x64xf32>
    %c16 = arith.constant 16 : index
    %c0_1 = arith.constant 0 : index
    %1 = vector.load %arg1[%c16, %c0_1] : memref<176x64xf32, #tpu.memory_space<vmem>>, vector<1x64xf32>
    %c0_2 = arith.constant 0 : index
    %c0_3 = arith.constant 0 : index
    %2 = vector.load %arg0[%c0_2, %c0_3] : memref<8x16xf32, #tpu.memory_space<vmem>>, vector<8x16xf32>
    %cst = arith.constant dense<0.000000e+00> : vector<8x64xf32>
    %3 = tpu.matmul %2, %0, %cst {dimension_numbers = #tpu.dot_dimension_numbers<[1], [0], [0], [1], [0, 0, 1, 1], [], []>} : vector<8x16xf32>, vector<16x64xf32>, vector<8x64xf32> -> vector<8x64xf32>
    %4 = vector.broadcast %1 : vector<1x64xf32> to vector<8x64xf32>
    %5 = arith.addf %3, %4 : vector<8x64xf32>
    %cst_4 = arith.constant 0.000000e+00 : f32
    %6 = vector.broadcast %cst_4 : f32 to vector<8x64xf32>
    %7 = arith.maximumf %5, %6 : vector<8x64xf32>
    %c24 = arith.constant 24 : index
    %c0_5 = arith.constant 0 : index
    %8 = vector.load %arg1[%c24, %c0_5] : memref<176x64xf32, #tpu.memory_space<vmem>>, vector<64x64xf32>
    %c88 = arith.constant 88 : index
    %c0_6 = arith.constant 0 : index
    %9 = vector.load %arg1[%c88, %c0_6] : memref<176x64xf32, #tpu.memory_space<vmem>>, vector<1x64xf32>
    %cst_7 = arith.constant dense<0.000000e+00> : vector<8x64xf32>
    %10 = tpu.matmul %7, %8, %cst_7 {dimension_numbers = #tpu.dot_dimension_numbers<[1], [0], [0], [1], [0, 0, 1, 1], [], []>} : vector<8x64xf32>, vector<64x64xf32>, vector<8x64xf32> -> vector<8x64xf32>
    %11 = vector.broadcast %9 : vector<1x64xf32> to vector<8x64xf32>
    %12 = arith.addf %10, %11 : vector<8x64xf32>
    %cst_8 = arith.constant 0.000000e+00 : f32
    %13 = vector.broadcast %cst_8 : f32 to vector<8x64xf32>
    %14 = arith.maximumf %12, %13 : vector<8x64xf32>
    %c96 = arith.constant 96 : index
    %c0_9 = arith.constant 0 : index
    %15 = vector.load %arg1[%c96, %c0_9] : memref<176x64xf32, #tpu.memory_space<vmem>>, vector<64x64xf32>
    %c160 = arith.constant 160 : index
    %c0_10 = arith.constant 0 : index
    %16 = vector.load %arg1[%c160, %c0_10] : memref<176x64xf32, #tpu.memory_space<vmem>>, vector<1x64xf32>
    %cst_11 = arith.constant dense<0.000000e+00> : vector<8x64xf32>
    %17 = tpu.matmul %14, %15, %cst_11 {dimension_numbers = #tpu.dot_dimension_numbers<[1], [0], [0], [1], [0, 0, 1, 1], [], []>} : vector<8x64xf32>, vector<64x64xf32>, vector<8x64xf32> -> vector<8x64xf32>
    %18 = vector.broadcast %16 : vector<1x64xf32> to vector<8x64xf32>
    %19 = arith.addf %17, %18 : vector<8x64xf32>
    %20 = vector.extract_strided_slice %19 {offsets = [0, 0], sizes = [8, 1], strides = [1, 1]} : vector<8x64xf32> to vector<8x1xf32>
    %21 = vector.extract_strided_slice %19 {offsets = [0, 1], sizes = [8, 1], strides = [1, 1]} : vector<8x64xf32> to vector<8x1xf32>
    %c168 = arith.constant 168 : index
    %c0_12 = arith.constant 0 : index
    %22 = vector.load %arg1[%c168, %c0_12] : memref<176x64xf32, #tpu.memory_space<vmem>>, vector<1x64xf32>
    %23 = vector.extract_strided_slice %22 {offsets = [0, 0], sizes = [1, 1], strides = [1, 1]} : vector<1x64xf32> to vector<1x1xf32>
    %24 = vector.extract_strided_slice %22 {offsets = [0, 1], sizes = [1, 1], strides = [1, 1]} : vector<1x64xf32> to vector<1x1xf32>
    %25 = vector.extract_strided_slice %22 {offsets = [0, 2], sizes = [1, 1], strides = [1, 1]} : vector<1x64xf32> to vector<1x1xf32>
    %26 = vector.extract_strided_slice %22 {offsets = [0, 3], sizes = [1, 1], strides = [1, 1]} : vector<1x64xf32> to vector<1x1xf32>
    %c0_13 = arith.constant 0 : index
    %c0_14 = arith.constant 0 : index
    %27 = vector.load %arg2[%c0_13, %c0_14] : memref<8x1xf32, #tpu.memory_space<vmem>>, vector<8x1xf32>
    %28 = vector.broadcast %23 : vector<1x1xf32> to vector<8x1xf32>
    %29 = arith.mulf %28, %27 : vector<8x1xf32>
    %30 = arith.addf %20, %29 : vector<8x1xf32>
    %cst_15 = arith.constant -1.000000e+00 : f32
    %31 = vector.broadcast %cst_15 : f32 to vector<8x1xf32>
    %32 = arith.subf %30, %31 : vector<8x1xf32>
    %cst_16 = arith.constant 2.000000e+00 : f32
    %33 = vector.broadcast %cst_16 : f32 to vector<8x1xf32>
    %34 = arith.mulf %32, %33 : vector<8x1xf32>
    %cst_17 = arith.constant 5.000000e-01 : f32
    %35 = vector.broadcast %cst_17 : f32 to vector<8x1xf32>
    %36 = arith.addf %34, %35 : vector<8x1xf32>
    %37 = math.floor %36 : vector<8x1xf32>
    %cst_18 = arith.constant 0.000000e+00 : f32
    %cst_19 = arith.constant 4.000000e+00 : f32
    %38 = vector.broadcast %cst_18 : f32 to vector<8x1xf32>
    %39 = arith.maximumf %38, %37 : vector<8x1xf32>
    %40 = vector.broadcast %cst_19 : f32 to vector<8x1xf32>
    %41 = arith.minimumf %40, %39 : vector<8x1xf32>
    %cst_20 = arith.constant 5.000000e-01 : f32
    %42 = vector.broadcast %cst_20 : f32 to vector<8x1xf32>
    %43 = arith.mulf %41, %42 : vector<8x1xf32>
    %cst_21 = arith.constant -1.000000e+00 : f32
    %44 = vector.broadcast %cst_21 : f32 to vector<8x1xf32>
    %45 = arith.addf %44, %43 : vector<8x1xf32>
    %46 = arith.subf %45, %20 : vector<8x1xf32>
    %47 = arith.mulf %46, %46 : vector<8x1xf32>
    %cst_22 = arith.constant 0.000000e+00 : f32
    %48 = vector.broadcast %cst_22 : f32 to vector<8x1xf32>
    %49 = arith.subf %48, %47 : vector<8x1xf32>
    %50 = vector.broadcast %24 : vector<1x1xf32> to vector<8x1xf32>
    %51 = arith.mulf %49, %50 : vector<8x1xf32>
    %52 = vector.broadcast %25 : vector<1x1xf32> to vector<8x1xf32>
    %53 = arith.addf %51, %52 : vector<8x1xf32>
    %cst_23 = arith.constant 0.000000e+00 : f32
    %54 = vector.broadcast %cst_23 : f32 to vector<8x1xf32>
    %55 = vector.broadcast %26 : vector<1x1xf32> to vector<8x1xf32>
    %56 = arith.addf %54, %55 : vector<8x1xf32>
    %57 = tpu.iota {dimensions = array<i32: 1>} : vector<8x4xi32>
    %c0_i32 = arith.constant 0 : i32
    %58 = vector.broadcast %c0_i32 : i32 to vector<8x4xi32>
    %59 = arith.cmpi eq, %57, %58 : vector<8x4xi32>
    %c1_i32 = arith.constant 1 : i32
    %60 = vector.broadcast %c1_i32 : i32 to vector<8x4xi32>
    %61 = arith.cmpi eq, %57, %60 : vector<8x4xi32>
    %c2_i32 = arith.constant 2 : i32
    %62 = vector.broadcast %c2_i32 : i32 to vector<8x4xi32>
    %63 = arith.cmpi eq, %57, %62 : vector<8x4xi32>
    %64 = vector.shape_cast %53 : vector<8x1xf32> to vector<8x1xf32>
    %65 = vector.broadcast %64 : vector<8x1xf32> to vector<8x4xf32>
    %66 = vector.shape_cast %56 : vector<8x1xf32> to vector<8x1xf32>
    %67 = vector.broadcast %66 : vector<8x1xf32> to vector<8x4xf32>
    %68 = arith.select %63, %65, %67 : vector<8x4xi1>, vector<8x4xf32>
    %69 = vector.shape_cast %21 : vector<8x1xf32> to vector<8x1xf32>
    %70 = vector.broadcast %69 : vector<8x1xf32> to vector<8x4xf32>
    %71 = arith.select %61, %70, %68 : vector<8x4xi1>, vector<8x4xf32>
    %72 = vector.shape_cast %45 : vector<8x1xf32> to vector<8x1xf32>
    %73 = vector.broadcast %72 : vector<8x1xf32> to vector<8x4xf32>
    %74 = arith.select %59, %73, %71 : vector<8x4xi1>, vector<8x4xf32>
    %c0_24 = arith.constant 0 : index
    %c0_25 = arith.constant 0 : index
    %75 = vector.load %arg3[%c0_24, %c0_25] : memref<8x4xf32, #tpu.memory_space<vmem>>, vector<8x4xf32>
    tpu.vector_store %arg3[%c0_24, %c0_25], %74 {strides = array<i32>} : memref<8x4xf32, #tpu.memory_space<vmem>>, vector<8x4xf32>,
    return
  }
}

</mosaic_0001>

<llo_original>
// kernel: tpu_custom_call.1
$region0: #{tpu_custom_call.1}
  #allocation0 [shape = 'u32[]', space=smem, size = 0x4, offset = 0x4, fixed_abs, tag = 'smem constant byte address 0x4 - core index']
  #allocation1 [shape = 'u32[144,128]{1,0:T(1,128)}', space=vmem, size = 0x12000, scoped, tag = 'internal scratch']
  %s0 = inlined_call_operand.vmem [shape: f32[8,16], index: 0, kind: input, shape index: {}]
  %s1 = inlined_call_operand.vmem [shape: f32[176,64], index: 1, kind: input, shape index: {}]
  %s2 = inlined_call_operand.vmem [shape: f32[8,1], index: 2, kind: input, shape index: {}]
  %s3 = inlined_call_operand.vmem [shape: f32[8,4], index: 3, kind: output, shape index: {}]
  %s4 = sld [smem:[#allocation0]]
  $region22: #{tpu_custom_call.1} parent=0
    _
  %s6 = ssub.s32 1, %s4
  %s7 = scalar_select 0, %s6, %s4
  // Predicated region
  $region2: #{tpu_custom_call.1} parent=0 // pred_check
    _
  $region3: #{tpu_custom_call.1} parent=0 // pred_check_branch
    %9 = sbr.rel (0) target = $region5
  $region4: #{tpu_custom_call.1} parent=0 // pred_region
    _
  $region5: #{tpu_custom_call.1} parent=0 // pred_fallthru
    _
  // Predicated region
  $region6: #{tpu_custom_call.1} parent=0 // pred_check
    _
  $region7: #{tpu_custom_call.1} parent=0 // pred_check_branch
    %11 = sbr.rel (0) target = $region9
  $region8: #{tpu_custom_call.1} parent=0 // pred_region
    _
  $region9: #{tpu_custom_call.1} parent=0 // pred_fallthru
    _
  // Predicated region
  $region10: #{tpu_custom_call.1} parent=0 // pred_check
    _
  $region11: #{tpu_custom_call.1} parent=0 // pred_check_branch
    %13 = sbr.rel (0) target = $region13
  $region12: #{tpu_custom_call.1} parent=0 // pred_region
    _
  $region13: #{tpu_custom_call.1} parent=0 // pred_fallthru
    _
  %v14 = vld [vmem:[%s1] sm:$0xff]
  %v15 = vld [vmem:[%s1 + $0x8] sm:$0xff]
  %v16 = vld [vmem:[%s1 + $0x10] sm:$0x1]
  %v17 = vld [vmem:[%s0] sm:$0xff]
  %v18 = vlaneseq
  %v19 = vshrl.u32 %v18, 7
  %v20 = vsub.s32 0, %v19
  %v21 = vrot.slane %v16, %v20
  %vm22 = vcmask 130048
  %v24 = vsel %vm22, %v17, 0
  %26 = vmatprep.subr.mxu0 0.0
  %27 = vmatpush1.msra.mxu0 %v14
  %28 = vmatprep.subr.mxu0 0.0
  %29 = vmatpush1.msra.mxu0 %v15
  %30 = vmatprep.subr.mxu0 0.0
  %31 = vmatpush1.msra.mxu0 0.0
  %32 = vmatprep.subr.mxu0 0.0
  %33 = vmatpush1.msra.mxu0 0.0
  %34 = vmatprep.subr.mxu0 0.0
  %35 = vmatpush1.msra.mxu0 0.0
  %36 = vmatprep.subr.mxu0 0.0
  %37 = vmatpush1.msra.mxu0 0.0
  %38 = vmatprep.subr.mxu0 0.0
  %39 = vmatpush1.msra.mxu0 0.0
  %40 = vmatprep.subr.mxu0 0.0
  %41 = vmatpush1.msra.mxu0 0.0
  %42 = vmatprep.subr.mxu0 0.0
  %43 = vmatpush1.msra.mxu0 0.0
  %44 = vmatprep.subr.mxu0 0.0
  %45 = vmatpush1.msra.mxu0 0.0
  %46 = vmatprep.subr.mxu0 0.0
  %47 = vmatpush1.msra.mxu0 0.0
  %48 = vmatprep.subr.mxu0 0.0
  %49 = vmatpush1.msra.mxu0 0.0
  %50 = vmatprep.subr.mxu0 0.0
  %51 = vmatpush1.msra.mxu0 0.0
  %52 = vmatprep.subr.mxu0 0.0
  %53 = vmatpush1.msra.mxu0 0.0
  %54 = vmatprep.subr.mxu0 0.0
  %55 = vmatpush1.msra.mxu0 0.0
  %56 = vmatprep.subr.mxu0 0.0
  %57 = vmatpush1.msra.mxu0 0.0
  %58 = vmatprep.subr.mxu0 0.0
  %59 = vmatpush1.msra.mxu0 0.0
  %60 = vmatprep.subr.mxu0 0.0
  %61 = vmatpush1.msra.mxu0 0.0
  %62 = vmatprep.subr.mxu0 0.0
  %63 = vmatpush1.msra.mxu0 0.0
  %64 = vmatprep.subr.mxu0 0.0
  %65 = vmatpush1.msra.mxu0 0.0
  %66 = vmatprep.subr.mxu0 0.0
  %67 = vmatpush1.msra.mxu0 0.0
  %68 = vmatprep.subr.mxu0 0.0
  %69 = vmatpush1.msra.mxu0 0.0
  %70 = vmatprep.subr.mxu0 0.0
  %71 = vmatpush1.msra.mxu0 0.0
  %72 = vmatprep.subr.mxu0 0.0
  %73 = vmatpush1.msra.mxu0 0.0
  %74 = vmatprep.subr.mxu0 0.0
  %75 = vmatpush1.msra.mxu0 0.0
  %76 = vmatprep.subr.mxu0 0.0
  %77 = vmatpush1.msra.mxu0 0.0
  %78 = vmatprep.subr.mxu0 0.0
  %79 = vmatpush1.msra.mxu0 0.0
  %80 = vmatprep.subr.mxu0 0.0
  %81 = vmatpush1.msra.mxu0 0.0
  %82 = vmatprep.subr.mxu0 0.0
  %83 = vmatpush1.msra.mxu0 0.0
  %84 = vmatprep.subr.mxu0 0.0
  %85 = vmatpush1.msra.mxu0 0.0
  %86 = vmatprep.subr.mxu0 0.0
  %87 = vmatpush1.msra.mxu0 0.0
  %88 = vmatprep.subr.mxu0 0.0
  %89 = vmatpush1.msra.mxu0 0.0
  %90 = vmatprep.mubr.f32.mxu0 0.0
  %91 = vmatmul.mubr.f32.gmra.mrb[0].mxu0 %v24
  %v92 = vpop.f32.mrb[0].mxu0
  %v93 = vadd.f32 %v21, %v92
  %v94 = vpop.f32.mrb[0].mxu0
  %95 = vdwg.mxu0
  %v96 = vmax.f32 %v93, 0.0
  %v97 = vld [vmem:[%s1 + $0x18] sm:$0xff]
  %v98 = vld [vmem:[%s1 + $0x20] sm:$0xff]
  %v99 = vld [vmem:[%s1 + $0x28] sm:$0xff]
  %v100 = vld [vmem:[%s1 + $0x30] sm:$0xff]
  %v101 = vld [vmem:[%s1 + $0x38] sm:$0xff]
  %v102 = vld [vmem:[%s1 + $0x40] sm:$0xff]
  %v103 = vld [vmem:[%s1 + $0x48] sm:$0xff]
  %v104 = vld [vmem:[%s1 + $0x50] sm:$0xff]
  %v105 = vld [vmem:[%s1 + $0x58] sm:$0x1]
  %v106 = vlaneseq
  %v107 = vshrl.u32 %v106, 7
  %v108 = vsub.s32 0, %v107
  %v109 = vrot.slane %v105, %v108
  %vm110 = vcmask 523264
  %v112 = vsel %vm110, %v96, 0
  %114 = vmatprep.subr.mxu0 0.0
  %115 = vmatpush1.msra.mxu0 %v97
  %116 = vmatprep.subr.mxu0 0.0
  %117 = vmatpush1.msra.mxu0 %v98
  %118 = vmatprep.subr.mxu0 0.0
  %119 = vmatpush1.msra.mxu0 %v99
  %120 = vmatprep.subr.mxu0 0.0
  %121 = vmatpush1.msra.mxu0 %v100
  %122 = vmatprep.subr.mxu0 0.0
  %123 = vmatpush1.msra.mxu0 %v101
  %124 = vmatprep.subr.mxu0 0.0
  %125 = vmatpush1.msra.mxu0 %v102
  %126 = vmatprep.subr.mxu0 0.0
  %127 = vmatpush1.msra.mxu0 %v103
  %128 = vmatprep.subr.mxu0 0.0
  %129 = vmatpush1.msra.mxu0 %v104
  %130 = vmatprep.subr.mxu0 0.0
  %131 = vmatpush1.msra.mxu0 0.0
  %132 = vmatprep.subr.mxu0 0.0
  %133 = vmatpush1.msra.mxu0 0.0
  %134 = vmatprep.subr.mxu0 0.0
  %135 = vmatpush1.msra.mxu0 0.0
  %136 = vmatprep.subr.mxu0 0.0
  %137 = vmatpush1.msra.mxu0 0.0
  %138 = vmatprep.subr.mxu0 0.0
  %139 = vmatpush1.msra.mxu0 0.0
  %140 = vmatprep.subr.mxu0 0.0
  %141 = vmatpush1.msra.mxu0 0.0
  %142 = vmatprep.subr.mxu0 0.0
  %143 = vmatpush1.msra.mxu0 0.0
  %144 = vmatprep.subr.mxu0 0.0
  %145 = vmatpush1.msra.mxu0 0.0
  %146 = vmatprep.subr.mxu0 0.0
  %147 = vmatpush1.msra.mxu0 0.0
  %148 = vmatprep.subr.mxu0 0.0
  %149 = vmatpush1.msra.mxu0 0.0
  %150 = vmatprep.subr.mxu0 0.0
  %151 = vmatpush1.msra.mxu0 0.0
  %152 = vmatprep.subr.mxu0 0.0
  %153 = vmatpush1.msra.mxu0 0.0
  %154 = vmatprep.subr.mxu0 0.0
  %155 = vmatpush1.msra.mxu0 0.0
  %156 = vmatprep.subr.mxu0 0.0
  %157 = vmatpush1.msra.mxu0 0.0
  %158 = vmatprep.subr.mxu0 0.0
  %159 = vmatpush1.msra.mxu0 0.0
  %160 = vmatprep.subr.mxu0 0.0
  %161 = vmatpush1.msra.mxu0 0.0
  %162 = vmatprep.subr.mxu0 0.0
  %163 = vmatpush1.msra.mxu0 0.0
  %164 = vmatprep.subr.mxu0 0.0
  %165 = vmatpush1.msra.mxu0 0.0
  %166 = vmatprep.subr.mxu0 0.0
  %167 = vmatpush1.msra.mxu0 0.0
  %168 = vmatprep.subr.mxu0 0.0
  %169 = vmatpush1.msra.mxu0 0.0
  %170 = vmatprep.subr.mxu0 0.0
  %171 = vmatpush1.msra.mxu0 0.0
  %172 = vmatprep.subr.mxu0 0.0
  %173 = vmatpush1.msra.mxu0 0.0
  %174 = vmatprep.subr.mxu0 0.0
  %175 = vmatpush1.msra.mxu0 0.0
  %176 = vmatprep.subr.mxu0 0.0
  %177 = vmatpush1.msra.mxu0 0.0
  %178 = vmatprep.mubr.f32.mxu0 0.0
  %179 = vmatmul.mubr.f32.gmra.mrb[0].mxu0 %v112
  %v180 = vpop.f32.mrb[0].mxu0
  %v181 = vadd.f32 %v109, %v180
  %v182 = vpop.f32.mrb[0].mxu0
  %183 = vdwg.mxu0
  %v184 = vmax.f32 %v181, 0.0
  %v185 = vld [vmem:[%s1 + $0x60] sm:$0xff]
  %v186 = vld [vmem:[%s1 + $0x68] sm:$0xff]
  %v187 = vld [vmem:[%s1 + $0x70] sm:$0xff]
  %v188 = vld [vmem:[%s1 + $0x78] sm:$0xff]
  %v189 = vld [vmem:[%s1 + $0x80] sm:$0xff]
  %v190 = vld [vmem:[%s1 + $0x88] sm:$0xff]
  %v191 = vld [vmem:[%s1 + $0x90] sm:$0xff]
  %v192 = vld [vmem:[%s1 + $0x98] sm:$0xff]
  %v193 = vld [vmem:[%s1 + $0xa0] sm:$0x1]
  %v194 = vlaneseq
  %v195 = vshrl.u32 %v194, 7
  %v196 = vsub.s32 0, %v195
  %v197 = vrot.slane %v193, %v196
  %v199 = vsel %vm110, %v184, 0
  %201 = vmatprep.subr.mxu0 0.0
  %202 = vmatpush1.msra.mxu0 %v185
  %203 = vmatprep.subr.mxu0 0.0
  %204 = vmatpush1.msra.mxu0 %v186
  %205 = vmatprep.subr.mxu0 0.0
  %206 = vmatpush1.msra.mxu0 %v187
  %207 = vmatprep.subr.mxu0 0.0
  %208 = vmatpush1.msra.mxu0 %v188
  %209 = vmatprep.subr.mxu0 0.0
  %210 = vmatpush1.msra.mxu0 %v189
  %211 = vmatprep.subr.mxu0 0.0
  %212 = vmatpush1.msra.mxu0 %v190
  %213 = vmatprep.subr.mxu0 0.0
  %214 = vmatpush1.msra.mxu0 %v191
  %215 = vmatprep.subr.mxu0 0.0
  %216 = vmatpush1.msra.mxu0 %v192
  %217 = vmatprep.subr.mxu0 0.0
  %218 = vmatpush1.msra.mxu0 0.0
  %219 = vmatprep.subr.mxu0 0.0
  %220 = vmatpush1.msra.mxu0 0.0
  %221 = vmatprep.subr.mxu0 0.0
  %222 = vmatpush1.msra.mxu0 0.0
  %223 = vmatprep.subr.mxu0 0.0
  %224 = vmatpush1.msra.mxu0 0.0
  %225 = vmatprep.subr.mxu0 0.0
  %226 = vmatpush1.msra.mxu0 0.0
  %227 = vmatprep.subr.mxu0 0.0
  %228 = vmatpush1.msra.mxu0 0.0
  %229 = vmatprep.subr.mxu0 0.0
  %230 = vmatpush1.msra.mxu0 0.0
  %231 = vmatprep.subr.mxu0 0.0
  %232 = vmatpush1.msra.mxu0 0.0
  %233 = vmatprep.subr.mxu0 0.0
  %234 = vmatpush1.msra.mxu0 0.0
  %235 = vmatprep.subr.mxu0 0.0
  %236 = vmatpush1.msra.mxu0 0.0
  %237 = vmatprep.subr.mxu0 0.0
  %238 = vmatpush1.msra.mxu0 0.0
  %239 = vmatprep.subr.mxu0 0.0
  %240 = vmatpush1.msra.mxu0 0.0
  %241 = vmatprep.subr.mxu0 0.0
  %242 = vmatpush1.msra.mxu0 0.0
  %243 = vmatprep.subr.mxu0 0.0
  %244 = vmatpush1.msra.mxu0 0.0
  %245 = vmatprep.subr.mxu0 0.0
  %246 = vmatpush1.msra.mxu0 0.0
  %247 = vmatprep.subr.mxu0 0.0
  %248 = vmatpush1.msra.mxu0 0.0
  %249 = vmatprep.subr.mxu0 0.0
  %250 = vmatpush1.msra.mxu0 0.0
  %251 = vmatprep.subr.mxu0 0.0
  %252 = vmatpush1.msra.mxu0 0.0
  %253 = vmatprep.subr.mxu0 0.0
  %254 = vmatpush1.msra.mxu0 0.0
  %255 = vmatprep.subr.mxu0 0.0
  %256 = vmatpush1.msra.mxu0 0.0
  %257 = vmatprep.subr.mxu0 0.0
  %258 = vmatpush1.msra.mxu0 0.0
  %259 = vmatprep.subr.mxu0 0.0
  %260 = vmatpush1.msra.mxu0 0.0
  %261 = vmatprep.subr.mxu0 0.0
  %262 = vmatpush1.msra.mxu0 0.0
  %263 = vmatprep.subr.mxu0 0.0
  %264 = vmatpush1.msra.mxu0 0.0
  %265 = vmatprep.mubr.f32.mxu0 0.0
  %266 = vmatmul.mubr.f32.gmra.mrb[0].mxu0 %v199
  %v267 = vpop.f32.mrb[0].mxu0
  %v268 = vadd.f32 %v197, %v267
  %v269 = vpop.f32.mrb[0].mxu0
  %270 = vdwg.mxu0
  %v271 = vld [vmem:[%s1 + $0xa8] sm:$0x1]
  %v272 = vld [vmem:[%s2] sm:$0xff]
  %v273 = vlaneseq
  %v274 = vshrl.u32 %v273, 7
  %v275 = vsub.s32 0, %v274
  %v276 = vrot.slane %v271, %v275
  %v277 = vmul.f32 %v276, %v272
  %v278 = vadd.f32 %v268, %v277
  %v279 = vsub.f32 %v278, -1.0
  %v280 = vmul.f32 %v279, 2.0
  %v281 = vadd.f32 %v280, 0.5
  %v282 = vfloor.f32 %v281
  %v283 = vmax.f32 %v282, 0.0
  %v284 = vmin.f32 %v283, 4.0
  %v285 = vmul.f32 %v284, 0.5
  %v286 = vadd.f32 %v285, -1.0
  %v287 = vsub.f32 %v286, %v268
  %v288 = vmul.f32 %v287, %v287
  %v289 = vsub.f32 0.0, %v288
  %291 = vrot.lane.b32.xlu0 %v276, 127
  %v292 = vpop.permute.xlu0 %291
  %v294 = vmul.f32 %v289, %v292
  %295 = vrot.lane.b32.xlu0 %v276, 126
  %v296 = vpop.permute.xlu0 %295
  %v298 = vadd.f32 %v294, %v296
  %v299 = vadd.f32 %v276, 0.0
  %v300 = vlaneseq
  %v301 = vand.u32 %v300, 127
  %vm302 = vcmp.eq.s32.totalorder %v301, 0
  %vm303 = vcmp.eq.s32.totalorder %v301, 1
  %vm304 = vcmp.eq.s32.totalorder %v301, 2
  %306 = vset.pattern.permute.xlu0 0
  %307 = vperm.xlu0 %306, %v298
  %v308 = vpop.permute.xlu0 %307
  %311 = vset.pattern.permute.xlu0 3
  %312 = vperm.xlu0 %311, %v299
  %v313 = vpop.permute.xlu0 %312
  %v315 = vsel %vm304, %v308, %v313
  %317 = vset.pattern.permute.xlu0 1
  %318 = vperm.xlu0 %317, %v268
  %v319 = vpop.permute.xlu0 %318
  %v321 = vsel %vm303, %v319, %v315
  %323 = vset.pattern.permute.xlu0 0
  %324 = vperm.xlu0 %323, %v286
  %v325 = vpop.permute.xlu0 %324
  %v327 = vsel %vm302, %v325, %v321
  %vm328 = vcmask 31744
  %329 = vst.msk [vmem:[%s3] sm:$0xff] %vm328, %v327
  // Predicated region
  $region14: #{tpu_custom_call.1} parent=0 // pred_check
    _
  $region15: #{tpu_custom_call.1} parent=0 // pred_check_branch
    %331 = sbr.rel (0) target = $region17
  $region16: #{tpu_custom_call.1} parent=0 // pred_region
    _
  $region17: #{tpu_custom_call.1} parent=0 // pred_fallthru
    _
  // Predicated region
  $region18: #{tpu_custom_call.1} parent=0 // pred_check
    _
  $region19: #{tpu_custom_call.1} parent=0 // pred_check_branch
    %333 = sbr.rel (0) target = $region21
  $region20: #{tpu_custom_call.1} parent=0 // pred_region
    _
  $region21: #{tpu_custom_call.1} parent=0 // pred_fallthru
    _

</llo_original>
